<compile_context>
chip_gen: v7x
topology: tpu7x:2x2x1
jax: 0.10.0
libtpu: 0.0.40
codegen_flags: <defaults>
</compile_context>

<pallas_src>
import functools

import jax
import jax.numpy as jnp
from jax.experimental import pallas as pl
from jax.experimental.pallas import tpu as pltpu


def _ae_kernel(num_layers, simnorm_dim, in_size, hidden,
               xT_ref,
               we0, weh, weo, wd0, wdh, wdo, bias_ref,
               xrecT_ref, hT_ref):
    f32 = jnp.float32
    x = xT_ref[...].astype(f32)                  # (in_size, TB): batch on lanes
    tb = x.shape[-1]
    ball = bias_ref[...]                         # (maxF, 6) packed biases

    def bcol(j, rows):
        # (rows, 1) bias column; broadcasts across the lane (batch) axis.
        return ball[:rows, j:j + 1]

    def linear(w, v, b, relu):
        y = jnp.dot(w, v, preferred_element_type=f32) + b
        return jnp.maximum(y, 0.0) if relu else y

    # ------------------------------ encoder ------------------------------
    h = linear(we0[...], x, bcol(0, hidden), True)
    weh_v = weh[...]                                           # hoisted shared weight
    beh_b = jnp.broadcast_to(bcol(1, hidden), (hidden, tb))    # hoisted broadcast
    for _ in range(num_layers):                                # shared-weight layers
        h = linear(weh_v, h, beh_b, True)
    z = linear(weo[...], h, bcol(2, hidden), False)            # (hidden, TB)

    # ------------------------ SimNorm (exact, sublane groups) -------------
    # Softmax over contiguous feature groups of size simnorm_dim.  Features sit
    # on sublanes, so each group is a (sd, TB) slab: per-group max/sum are
    # plain sublane reductions, per-group max shift is exact.
    sd = simnorm_dim
    parts = []
    for g in range(hidden // sd):
        zg = z[g * sd:(g + 1) * sd, :]
        zg = zg - jnp.max(zg, axis=0, keepdims=True)
        eg = jnp.exp(zg)
        sg = jnp.sum(eg, axis=0, keepdims=True)
        parts.append(eg * pl.reciprocal(sg, approx=False))
    hcode = jnp.concatenate(parts, axis=0) if len(parts) > 1 else parts[0]
    hT_ref[...] = hcode                          # single lane-dense store

    # ------------------------------ decoder ------------------------------
    d = linear(wd0[...], hcode, bcol(3, hidden), True)
    wdh_v = wdh[...]                                           # hoisted shared weight
    bdh_b = jnp.broadcast_to(bcol(4, hidden), (hidden, tb))    # hoisted broadcast
    for _ in range(num_layers):                                # shared-weight layers
        d = linear(wdh_v, d, bdh_b, True)
    xrecT_ref[...] = linear(wdo[...], d, bcol(5, in_size), False)


_W_ORDER = ("we0", "weh", "weo", "wd0", "wdh", "wdo")
_B_ORDER = ("be0", "beh", "beo", "bd0", "bdh", "bdo")


def _num_tensorcores():
    """Best-effort TensorCore-per-device count (v7x has 2, earlier gens 1)."""
    try:
        kind = jax.devices()[0].device_kind.lower()
    except Exception:
        return 1
    return 2 if ("v7" in kind or "7x" in kind) else 1


def ae_forward(x, params, *, num_layers, simnorm_dim, num_cores=None):
    """params: weights in PyTorch (out, in) layout, biases shape (out,)."""
    B, in_size = x.shape
    hidden = params["we0"].shape[0]
    assert hidden % simnorm_dim == 0, "hidden_size must be divisible by simnorm_dim"

    # Batch-on-lanes: kernel consumes x^T and produces transposed outputs.
    xT = x.T.astype(jnp.float32)                               # (in_size, B)

    # Grid sizing: 1 step on single-TC chips; num_cores steps (tb multiple of
    # 128) on multi-TC chips.  VMEM footprint is KB-scale on every generation.
    if num_cores is None:
        num_cores = _num_tensorcores()
    if num_cores >= 2 and B % (128 * num_cores) == 0:
        tb = B // num_cores
        grid = (num_cores,)
    else:
        tb = B
        grid = (1,)

    # Pack the 6 bias vectors into a single (maxF, 6) array: one DMA, one tile.
    maxF = max(hidden, in_size)
    def _col(b):
        b = jnp.asarray(b, jnp.float32).reshape(-1)
        return jnp.zeros((maxF,), jnp.float32).at[:b.shape[0]].set(b)
    bpack = jnp.stack([_col(params[k]) for k in _B_ORDER], axis=1)   # (maxF, 6)

    w_args = [jnp.asarray(params[k], jnp.float32) for k in _W_ORDER]

    const2d = lambda i: (0, 0)
    in_specs = ([pl.BlockSpec((in_size, tb), lambda i: (0, i))]
                + [pl.BlockSpec(w.shape, const2d) for w in w_args]
                + [pl.BlockSpec(bpack.shape, const2d)])
    out_specs = (
        pl.BlockSpec((in_size, tb), lambda i: (0, i)),     # x_recon^T
        pl.BlockSpec((hidden, tb), lambda i: (0, i)),      # h^T (latent)
    )
    out_shape = (
        jax.ShapeDtypeStruct((in_size, B), jnp.float32),
        jax.ShapeDtypeStruct((hidden, B), jnp.float32),
    )

    macs = (in_size * hidden
            + (2 * num_layers + 2) * hidden * hidden
            + hidden * in_size)
    flops = 2 * B * macs
    transcendentals = B * (hidden + hidden // simnorm_dim)   # exp + reciprocal
    bytes_accessed = int(4 * (xT.size + sum(w.size for w in w_args) + bpack.size
                              + B * in_size + B * hidden))

    kernel = functools.partial(_ae_kernel, num_layers, simnorm_dim, in_size, hidden)
    xrecT, hT = pl.pallas_call(
        kernel,
        grid=grid,
        in_specs=in_specs,
        out_specs=out_specs,
        out_shape=out_shape,
        compiler_params=pltpu.CompilerParams(
            dimension_semantics=("parallel",)),
        cost_estimate=pl.CostEstimate(
            flops=flops, transcendentals=transcendentals,
            bytes_accessed=bytes_accessed),
    )(xT, *w_args, bpack)

    # Cheap transposes back to (B, F) layout in XLA.
    return xrecT.T, hT.T


def _init_linear(key, fan_in, fan_out):
    """PyTorch-style init, PyTorch layout: W (out, in), b (out,)."""
    kw, kb = jax.random.split(key)
    bound = 1.0 / float(jnp.sqrt(jnp.float32(fan_in)))
    w = jax.random.uniform(kw, (fan_out, fan_in), jnp.float32, -bound, bound)
    b = jax.random.uniform(kb, (fan_out,), jnp.float32, -bound, bound)
    return w, b


def _reference_forward(x, p, num_layers, simnorm_dim):
    """Pure-JAX reference mirroring the PyTorch module."""
    def lin(v, w, b, relu):
        y = v @ w.T + b
        return jnp.maximum(y, 0.0) if relu else y

    h = lin(x, p["we0"], p["be0"], True)
    for _ in range(num_layers):
        h = lin(h, p["weh"], p["beh"], True)
    z = lin(h, p["weo"], p["beo"], False)
    B, H = z.shape
    zg = z.reshape(B, H // simnorm_dim, simnorm_dim)
    hcode = jax.nn.softmax(zg, axis=-1).reshape(B, H)
    d = lin(hcode, p["wd0"], p["bd0"], True)
    for _ in range(num_layers):
        d = lin(d, p["wdh"], p["bdh"], True)
    xrec = lin(d, p["wdo"], p["bdo"], False)
    return xrec, hcode


if __name__ == "__main__":
    # Config consistent with AE(NetworkConfig):
    #   input_size=16, hidden_size=32, AE_num_layers=2, simnorm_dim=8,
    #   activation='relu', dropout=0.0, enable_AE_simnorm=True
    INPUT_SIZE = 16
    HIDDEN_SIZE = 32
    NUM_LAYERS = 2
    SIMNORM_DIM = 8

    root = jax.random.PRNGKey(0)
    kx, kx2, k0, k1, k2, k3, k4, k5 = jax.random.split(root, 8)

    params = {}
    # encoder: in->hid, hid->hid (shared), hid->hid (+SimNorm)
    params["we0"], params["be0"] = _init_linear(k0, INPUT_SIZE, HIDDEN_SIZE)
    params["weh"], params["beh"] = _init_linear(k1, HIDDEN_SIZE, HIDDEN_SIZE)
    params["weo"], params["beo"] = _init_linear(k2, HIDDEN_SIZE, HIDDEN_SIZE)
    # decoder: hid->hid, hid->hid (shared), hid->in
    params["wd0"], params["bd0"] = _init_linear(k3, HIDDEN_SIZE, HIDDEN_SIZE)
    params["wdh"], params["bdh"] = _init_linear(k4, HIDDEN_SIZE, HIDDEN_SIZE)
    params["wdo"], params["bdo"] = _init_linear(k5, HIDDEN_SIZE, INPUT_SIZE)

    # --- small batch (grid=(1,)) ---
    x = jax.random.normal(kx, (8, INPUT_SIZE), jnp.float32)
    x_recon, h = ae_forward(x, params, num_layers=NUM_LAYERS,
                            simnorm_dim=SIMNORM_DIM)
    jax.block_until_ready((x_recon, h))
    xr_ref, h_ref = _reference_forward(x, params, NUM_LAYERS, SIMNORM_DIM)
    assert jnp.allclose(x_recon, xr_ref, atol=1e-5, rtol=1e-5)
    assert jnp.allclose(h, h_ref, atol=1e-5, rtol=1e-5)

    # --- larger batch, lane-dense outputs (auto grid: 1 step on v5e/v6e,
    #     2 steps on v7x) ---
    x2 = jax.random.normal(kx2, (256, INPUT_SIZE), jnp.float32)
    x_recon2, h2 = ae_forward(x2, params, num_layers=NUM_LAYERS,
                              simnorm_dim=SIMNORM_DIM)
    jax.block_until_ready((x_recon2, h2))
    xr_ref2, h_ref2 = _reference_forward(x2, params, NUM_LAYERS, SIMNORM_DIM)
    assert jnp.allclose(x_recon2, xr_ref2, atol=1e-5, rtol=1e-5)
    assert jnp.allclose(h2, h_ref2, atol=1e-5, rtol=1e-5)

    # --- forced 2-way batch tiling (exercises the v7x-style grid=(2,) path;
    #     correct but serial on 1-TC chips) ---
    x_recon3, h3 = ae_forward(x2, params, num_layers=NUM_LAYERS,
                              simnorm_dim=SIMNORM_DIM, num_cores=2)
    jax.block_until_ready((x_recon3, h3))
    assert jnp.allclose(x_recon3, xr_ref2, atol=1e-5, rtol=1e-5)
    assert jnp.allclose(h3, h_ref2, atol=1e-5, rtol=1e-5)

    print("KERNEL_OK")
</pallas_src>

<mosaic_0001>
module attributes {stable_mosaic.version = 11 : i64} {
  func.func @_ae_kernel(%arg0: i32, %arg1: memref<16x8xf32, #tpu.memory_space<vmem>>, %arg2: memref<32x16xf32, #tpu.memory_space<vmem>>, %arg3: memref<32x32xf32, #tpu.memory_space<vmem>>, %arg4: memref<32x32xf32, #tpu.memory_space<vmem>>, %arg5: memref<32x32xf32, #tpu.memory_space<vmem>>, %arg6: memref<32x32xf32, #tpu.memory_space<vmem>>, %arg7: memref<16x32xf32, #tpu.memory_space<vmem>>, %arg8: memref<32x6xf32, #tpu.memory_space<vmem>>, %arg9: memref<16x8xf32, #tpu.memory_space<vmem>>, %arg10: memref<32x8xf32, #tpu.memory_space<vmem>>) attributes {dimension_semantics = [#tpu.dimension_semantics<parallel>], iteration_bounds = array<i64: 1>, scalar_prefetch = 0 : i64, scratch_operands = 0 : i64, tpu.core_type = #tpu.core_type<tc>, window_params = [{transform_indices = @transform_0, window_bounds = array<i64: 16, 8>}, {pipeline_mode = #tpu.pipeline_mode<synchronous>, transform_indices = @transform_1, window_bounds = array<i64: 32, 16>}, {pipeline_mode = #tpu.pipeline_mode<synchronous>, transform_indices = @transform_2, window_bounds = array<i64: 32, 32>}, {pipeline_mode = #tpu.pipeline_mode<synchronous>, transform_indices = @transform_3, window_bounds = array<i64: 32, 32>}, {pipeline_mode = #tpu.pipeline_mode<synchronous>, transform_indices = @transform_4, window_bounds = array<i64: 32, 32>}, {pipeline_mode = #tpu.pipeline_mode<synchronous>, transform_indices = @transform_5, window_bounds = array<i64: 32, 32>}, {pipeline_mode = #tpu.pipeline_mode<synchronous>, transform_indices = @transform_6, window_bounds = array<i64: 16, 32>}, {pipeline_mode = #tpu.pipeline_mode<synchronous>, transform_indices = @transform_7, window_bounds = array<i64: 32, 6>}, {transform_indices = @transform_8, window_bounds = array<i64: 16, 8>}, {transform_indices = @transform_9, window_bounds = array<i64: 32, 8>}]} {
    %c0 = arith.constant 0 : index
    %c0_0 = arith.constant 0 : index
    %0 = vector.load %arg1[%c0, %c0_0] : memref<16x8xf32, #tpu.memory_space<vmem>>, vector<16x8xf32>
    %c0_1 = arith.constant 0 : index
    %c0_2 = arith.constant 0 : index
    %1 = vector.load %arg8[%c0_1, %c0_2] : memref<32x6xf32, #tpu.memory_space<vmem>>, vector<32x6xf32>
    %c0_3 = arith.constant 0 : index
    %c0_4 = arith.constant 0 : index
    %2 = vector.load %arg2[%c0_3, %c0_4] : memref<32x16xf32, #tpu.memory_space<vmem>>, vector<32x16xf32>
    %3 = vector.extract_strided_slice %1 {offsets = [0, 0], sizes = [32, 1], strides = [1, 1]} : vector<32x6xf32> to vector<32x1xf32>
    %cst = arith.constant dense<0.000000e+00> : vector<32x8xf32>
    %4 = tpu.matmul %2, %0, %cst {dimension_numbers = #tpu.dot_dimension_numbers<[1], [0], [0], [1], [0, 0, 1, 1], [], []>} : vector<32x16xf32>, vector<16x8xf32>, vector<32x8xf32> -> vector<32x8xf32>
    %5 = vector.broadcast %3 : vector<32x1xf32> to vector<32x8xf32>
    %6 = arith.addf %4, %5 : vector<32x8xf32>
    %cst_5 = arith.constant 0.000000e+00 : f32
    %7 = vector.broadcast %cst_5 : f32 to vector<32x8xf32>
    %8 = arith.maximumf %6, %7 : vector<32x8xf32>
    %c0_6 = arith.constant 0 : index
    %c0_7 = arith.constant 0 : index
    %9 = vector.load %arg3[%c0_6, %c0_7] : memref<32x32xf32, #tpu.memory_space<vmem>>, vector<32x32xf32>
    %10 = vector.extract_strided_slice %1 {offsets = [0, 1], sizes = [32, 1], strides = [1, 1]} : vector<32x6xf32> to vector<32x1xf32>
    %11 = vector.shape_cast %10 : vector<32x1xf32> to vector<32x1xf32>
    %12 = vector.broadcast %11 : vector<32x1xf32> to vector<32x8xf32>
    %cst_8 = arith.constant dense<0.000000e+00> : vector<32x8xf32>
    %13 = tpu.matmul %9, %8, %cst_8 {dimension_numbers = #tpu.dot_dimension_numbers<[1], [0], [0], [1], [0, 0, 1, 1], [], []>} : vector<32x32xf32>, vector<32x8xf32>, vector<32x8xf32> -> vector<32x8xf32>
    %14 = arith.addf %13, %12 : vector<32x8xf32>
    %cst_9 = arith.constant 0.000000e+00 : f32
    %15 = vector.broadcast %cst_9 : f32 to vector<32x8xf32>
    %16 = arith.maximumf %14, %15 : vector<32x8xf32>
    %cst_10 = arith.constant dense<0.000000e+00> : vector<32x8xf32>
    %17 = tpu.matmul %9, %16, %cst_10 {dimension_numbers = #tpu.dot_dimension_numbers<[1], [0], [0], [1], [0, 0, 1, 1], [], []>} : vector<32x32xf32>, vector<32x8xf32>, vector<32x8xf32> -> vector<32x8xf32>
    %18 = arith.addf %17, %12 : vector<32x8xf32>
    %cst_11 = arith.constant 0.000000e+00 : f32
    %19 = vector.broadcast %cst_11 : f32 to vector<32x8xf32>
    %20 = arith.maximumf %18, %19 : vector<32x8xf32>
    %c0_12 = arith.constant 0 : index
    %c0_13 = arith.constant 0 : index
    %21 = vector.load %arg4[%c0_12, %c0_13] : memref<32x32xf32, #tpu.memory_space<vmem>>, vector<32x32xf32>
    %22 = vector.extract_strided_slice %1 {offsets = [0, 2], sizes = [32, 1], strides = [1, 1]} : vector<32x6xf32> to vector<32x1xf32>
    %cst_14 = arith.constant dense<0.000000e+00> : vector<32x8xf32>
    %23 = tpu.matmul %21, %20, %cst_14 {dimension_numbers = #tpu.dot_dimension_numbers<[1], [0], [0], [1], [0, 0, 1, 1], [], []>} : vector<32x32xf32>, vector<32x8xf32>, vector<32x8xf32> -> vector<32x8xf32>
    %24 = vector.broadcast %22 : vector<32x1xf32> to vector<32x8xf32>
    %25 = arith.addf %23, %24 : vector<32x8xf32>
    %26 = vector.extract_strided_slice %25 {offsets = [0, 0], sizes = [8, 8], strides = [1, 1]} : vector<32x8xf32> to vector<8x8xf32>
    %cst_15 = arith.constant dense<0xFF800000> : vector<8xf32>
    %27 = vector.multi_reduction <maximumf>, %26, %cst_15 [0] : vector<8x8xf32> to vector<8xf32>
    %28 = vector.shape_cast %27 : vector<8xf32> to vector<1x8xf32>
    %29 = vector.broadcast %28 : vector<1x8xf32> to vector<8x8xf32>
    %30 = arith.subf %26, %29 : vector<8x8xf32>
    %31 = math.exp %30 : vector<8x8xf32>
    %cst_16 = arith.constant dense<0.000000e+00> : vector<8xf32>
    %32 = vector.multi_reduction <add>, %31, %cst_16 [0] : vector<8x8xf32> to vector<8xf32>
    %33 = vector.shape_cast %32 : vector<8xf32> to vector<1x8xf32>
    %34 = tpu.reciprocal %33 : vector<1x8xf32> -> vector<1x8xf32>
    %35 = vector.broadcast %34 : vector<1x8xf32> to vector<8x8xf32>
    %36 = arith.mulf %31, %35 : vector<8x8xf32>
    %37 = vector.extract_strided_slice %25 {offsets = [8, 0], sizes = [8, 8], strides = [1, 1]} : vector<32x8xf32> to vector<8x8xf32>
    %cst_17 = arith.constant dense<0xFF800000> : vector<8xf32>
    %38 = vector.multi_reduction <maximumf>, %37, %cst_17 [0] : vector<8x8xf32> to vector<8xf32>
    %39 = vector.shape_cast %38 : vector<8xf32> to vector<1x8xf32>
    %40 = vector.broadcast %39 : vector<1x8xf32> to vector<8x8xf32>
    %41 = arith.subf %37, %40 : vector<8x8xf32>
    %42 = math.exp %41 : vector<8x8xf32>
    %cst_18 = arith.constant dense<0.000000e+00> : vector<8xf32>
    %43 = vector.multi_reduction <add>, %42, %cst_18 [0] : vector<8x8xf32> to vector<8xf32>
    %44 = vector.shape_cast %43 : vector<8xf32> to vector<1x8xf32>
    %45 = tpu.reciprocal %44 : vector<1x8xf32> -> vector<1x8xf32>
    %46 = vector.broadcast %45 : vector<1x8xf32> to vector<8x8xf32>
    %47 = arith.mulf %42, %46 : vector<8x8xf32>
    %48 = vector.extract_strided_slice %25 {offsets = [16, 0], sizes = [8, 8], strides = [1, 1]} : vector<32x8xf32> to vector<8x8xf32>
    %cst_19 = arith.constant dense<0xFF800000> : vector<8xf32>
    %49 = vector.multi_reduction <maximumf>, %48, %cst_19 [0] : vector<8x8xf32> to vector<8xf32>
    %50 = vector.shape_cast %49 : vector<8xf32> to vector<1x8xf32>
    %51 = vector.broadcast %50 : vector<1x8xf32> to vector<8x8xf32>
    %52 = arith.subf %48, %51 : vector<8x8xf32>
    %53 = math.exp %52 : vector<8x8xf32>
    %cst_20 = arith.constant dense<0.000000e+00> : vector<8xf32>
    %54 = vector.multi_reduction <add>, %53, %cst_20 [0] : vector<8x8xf32> to vector<8xf32>
    %55 = vector.shape_cast %54 : vector<8xf32> to vector<1x8xf32>
    %56 = tpu.reciprocal %55 : vector<1x8xf32> -> vector<1x8xf32>
    %57 = vector.broadcast %56 : vector<1x8xf32> to vector<8x8xf32>
    %58 = arith.mulf %53, %57 : vector<8x8xf32>
    %59 = vector.extract_strided_slice %25 {offsets = [24, 0], sizes = [8, 8], strides = [1, 1]} : vector<32x8xf32> to vector<8x8xf32>
    %cst_21 = arith.constant dense<0xFF800000> : vector<8xf32>
    %60 = vector.multi_reduction <maximumf>, %59, %cst_21 [0] : vector<8x8xf32> to vector<8xf32>
    %61 = vector.shape_cast %60 : vector<8xf32> to vector<1x8xf32>
    %62 = vector.broadcast %61 : vector<1x8xf32> to vector<8x8xf32>
    %63 = arith.subf %59, %62 : vector<8x8xf32>
    %64 = math.exp %63 : vector<8x8xf32>
    %cst_22 = arith.constant dense<0.000000e+00> : vector<8xf32>
    %65 = vector.multi_reduction <add>, %64, %cst_22 [0] : vector<8x8xf32> to vector<8xf32>
    %66 = vector.shape_cast %65 : vector<8xf32> to vector<1x8xf32>
    %67 = tpu.reciprocal %66 : vector<1x8xf32> -> vector<1x8xf32>
    %68 = vector.broadcast %67 : vector<1x8xf32> to vector<8x8xf32>
    %69 = arith.mulf %64, %68 : vector<8x8xf32>
    %70 = tpu.concatenate %36, %47, %58, %69 in 0 : vector<8x8xf32>, vector<8x8xf32>, vector<8x8xf32>, vector<8x8xf32> -> vector<32x8xf32>
    %c0_23 = arith.constant 0 : index
    %c0_24 = arith.constant 0 : index
    %71 = vector.load %arg10[%c0_23, %c0_24] : memref<32x8xf32, #tpu.memory_space<vmem>>, vector<32x8xf32>
    tpu.vector_store %arg10[%c0_23, %c0_24], %70 {strides = array<i32>} : memref<32x8xf32, #tpu.memory_space<vmem>>, vector<32x8xf32>,
    %c0_25 = arith.constant 0 : index
    %c0_26 = arith.constant 0 : index
    %72 = vector.load %arg5[%c0_25, %c0_26] : memref<32x32xf32, #tpu.memory_space<vmem>>, vector<32x32xf32>
    %73 = vector.extract_strided_slice %1 {offsets = [0, 3], sizes = [32, 1], strides = [1, 1]} : vector<32x6xf32> to vector<32x1xf32>
    %cst_27 = arith.constant dense<0.000000e+00> : vector<32x8xf32>
    %74 = tpu.matmul %72, %70, %cst_27 {dimension_numbers = #tpu.dot_dimension_numbers<[1], [0], [0], [1], [0, 0, 1, 1], [], []>} : vector<32x32xf32>, vector<32x8xf32>, vector<32x8xf32> -> vector<32x8xf32>
    %75 = vector.broadcast %73 : vector<32x1xf32> to vector<32x8xf32>
    %76 = arith.addf %74, %75 : vector<32x8xf32>
    %cst_28 = arith.constant 0.000000e+00 : f32
    %77 = vector.broadcast %cst_28 : f32 to vector<32x8xf32>
    %78 = arith.maximumf %76, %77 : vector<32x8xf32>
    %c0_29 = arith.constant 0 : index
    %c0_30 = arith.constant 0 : index
    %79 = vector.load %arg6[%c0_29, %c0_30] : memref<32x32xf32, #tpu.memory_space<vmem>>, vector<32x32xf32>
    %80 = vector.extract_strided_slice %1 {offsets = [0, 4], sizes = [32, 1], strides = [1, 1]} : vector<32x6xf32> to vector<32x1xf32>
    %81 = vector.shape_cast %80 : vector<32x1xf32> to vector<32x1xf32>
    %82 = vector.broadcast %81 : vector<32x1xf32> to vector<32x8xf32>
    %cst_31 = arith.constant dense<0.000000e+00> : vector<32x8xf32>
    %83 = tpu.matmul %79, %78, %cst_31 {dimension_numbers = #tpu.dot_dimension_numbers<[1], [0], [0], [1], [0, 0, 1, 1], [], []>} : vector<32x32xf32>, vector<32x8xf32>, vector<32x8xf32> -> vector<32x8xf32>
    %84 = arith.addf %83, %82 : vector<32x8xf32>
    %cst_32 = arith.constant 0.000000e+00 : f32
    %85 = vector.broadcast %cst_32 : f32 to vector<32x8xf32>
    %86 = arith.maximumf %84, %85 : vector<32x8xf32>
    %cst_33 = arith.constant dense<0.000000e+00> : vector<32x8xf32>
    %87 = tpu.matmul %79, %86, %cst_33 {dimension_numbers = #tpu.dot_dimension_numbers<[1], [0], [0], [1], [0, 0, 1, 1], [], []>} : vector<32x32xf32>, vector<32x8xf32>, vector<32x8xf32> -> vector<32x8xf32>
    %88 = arith.addf %87, %82 : vector<32x8xf32>
    %cst_34 = arith.constant 0.000000e+00 : f32
    %89 = vector.broadcast %cst_34 : f32 to vector<32x8xf32>
    %90 = arith.maximumf %88, %89 : vector<32x8xf32>
    %c0_35 = arith.constant 0 : index
    %c0_36 = arith.constant 0 : index
    %91 = vector.load %arg7[%c0_35, %c0_36] : memref<16x32xf32, #tpu.memory_space<vmem>>, vector<16x32xf32>
    %92 = vector.extract_strided_slice %1 {offsets = [0, 5], sizes = [16, 1], strides = [1, 1]} : vector<32x6xf32> to vector<16x1xf32>
    %cst_37 = arith.constant dense<0.000000e+00> : vector<16x8xf32>
    %93 = tpu.matmul %91, %90, %cst_37 {dimension_numbers = #tpu.dot_dimension_numbers<[1], [0], [0], [1], [0, 0, 1, 1], [], []>} : vector<16x32xf32>, vector<32x8xf32>, vector<16x8xf32> -> vector<16x8xf32>
    %94 = vector.broadcast %92 : vector<16x1xf32> to vector<16x8xf32>
    %95 = arith.addf %93, %94 : vector<16x8xf32>
    %c0_38 = arith.constant 0 : index
    %c0_39 = arith.constant 0 : index
    %96 = vector.load %arg9[%c0_38, %c0_39] : memref<16x8xf32, #tpu.memory_space<vmem>>, vector<16x8xf32>
    tpu.vector_store %arg9[%c0_38, %c0_39], %95 {strides = array<i32>} : memref<16x8xf32, #tpu.memory_space<vmem>>, vector<16x8xf32>,
    return
  }
  func.func @transform_0(%arg0: i32) -> (i32, i32) {
    %c0_i32 = arith.constant 0 : i32
    %c0_i32_0 = arith.constant 0 : i32
    return %c0_i32, %arg0 : i32, i32
  }
  func.func @transform_1(%arg0: i32) -> (i32, i32) {
    %c0_i32 = arith.constant 0 : i32
    %c0_i32_0 = arith.constant 0 : i32
    %c0_i32_1 = arith.constant 0 : i32
    return %c0_i32, %c0_i32_0 : i32, i32
  }
  func.func @transform_2(%arg0: i32) -> (i32, i32) {
    %c0_i32 = arith.constant 0 : i32
    %c0_i32_0 = arith.constant 0 : i32
    %c0_i32_1 = arith.constant 0 : i32
    return %c0_i32, %c0_i32_0 : i32, i32
  }
  func.func @transform_3(%arg0: i32) -> (i32, i32) {
    %c0_i32 = arith.constant 0 : i32
    %c0_i32_0 = arith.constant 0 : i32
    %c0_i32_1 = arith.constant 0 : i32
    return %c0_i32, %c0_i32_0 : i32, i32
  }
  func.func @transform_4(%arg0: i32) -> (i32, i32) {
    %c0_i32 = arith.constant 0 : i32
    %c0_i32_0 = arith.constant 0 : i32
    %c0_i32_1 = arith.constant 0 : i32
    return %c0_i32, %c0_i32_0 : i32, i32
  }
  func.func @transform_5(%arg0: i32) -> (i32, i32) {
    %c0_i32 = arith.constant 0 : i32
    %c0_i32_0 = arith.constant 0 : i32
    %c0_i32_1 = arith.constant 0 : i32
    return %c0_i32, %c0_i32_0 : i32, i32
  }
  func.func @transform_6(%arg0: i32) -> (i32, i32) {
    %c0_i32 = arith.constant 0 : i32
    %c0_i32_0 = arith.constant 0 : i32
    %c0_i32_1 = arith.constant 0 : i32
    return %c0_i32, %c0_i32_0 : i32, i32
  }
  func.func @transform_7(%arg0: i32) -> (i32, i32) {
    %c0_i32 = arith.constant 0 : i32
    %c0_i32_0 = arith.constant 0 : i32
    %c0_i32_1 = arith.constant 0 : i32
    return %c0_i32, %c0_i32_0 : i32, i32
  }
  func.func @transform_8(%arg0: i32) -> (i32, i32) {
    %c0_i32 = arith.constant 0 : i32
    %c0_i32_0 = arith.constant 0 : i32
    return %c0_i32, %arg0 : i32, i32
  }
  func.func @transform_9(%arg0: i32) -> (i32, i32) {
    %c0_i32 = arith.constant 0 : i32
    %c0_i32_0 = arith.constant 0 : i32
    return %c0_i32, %arg0 : i32, i32
  }
}

</mosaic_0001>

<llo_original>
// kernel: tpu_custom_call.1
$region0: #{tpu_custom_call.1}
  #allocation0 [shape = 'u32[]', space=smem, size = 0x4, offset = 0x4, fixed_abs, tag = 'smem constant byte address 0x4 - core index']
  #allocation1 [shape = 'u32[144,128]{1,0:T(1,128)}', space=vmem, size = 0x12000, scoped, tag = 'internal scratch']
  %s0 = inlined_call_operand.vmem [shape: f32[16,8], index: 0, kind: input, shape index: {}]
  %s1 = inlined_call_operand.vmem [shape: f32[32,16], index: 1, kind: input, shape index: {}]
  %s2 = inlined_call_operand.vmem [shape: f32[32,32], index: 2, kind: input, shape index: {}]
  %s3 = inlined_call_operand.vmem [shape: f32[32,32], index: 3, kind: input, shape index: {}]
  %s4 = inlined_call_operand.vmem [shape: f32[32,32], index: 4, kind: input, shape index: {}]
  %s5 = inlined_call_operand.vmem [shape: f32[32,32], index: 5, kind: input, shape index: {}]
  %s6 = inlined_call_operand.hbm [shape: f32[16,32], index: 6, kind: input, shape index: {}]
  %s7 = inlined_call_operand.vmem [shape: f32[32,6], index: 7, kind: input, shape index: {}]
  %s8 = inlined_call_operand.vmem [shape: f32[16,8], index: 8, kind: output, shape index: {0}]
  %s9 = inlined_call_operand.vmem [shape: f32[32,8], index: 9, kind: output, shape index: {1}]
  %10 = xla_tuple %s8, %s9
  %s11 = sld [smem:[#allocation0]]
  $region54: #{tpu_custom_call.1} parent=0
    _
  %s13 = ssub.s32 1, %s11
  %s14 = scalar_select 0, %s13, %s11
  $region1: #{tpu_custom_call.1} parent=0
    #allocation2 [shape = 'u8[8192]{0}', space=vmem, size = 0x2000, scoped, tag = 'input window, operand 6, single buffered']
    #allocation3 [shape = 's32[1]{0}', space=sflag, size = 0x4, scoped, tag = 'scoped memory for tpu_custom_call.1']
    %15 = vsyncpa [#allocation3], 0
    // Predicated region
    $region2: #{tpu_custom_call.1} parent=1 // pred_check
      _
    $region3: #{tpu_custom_call.1} parent=1 // pred_check_branch
      %17 = sbr.rel (0) target = $region5
    $region4: #{tpu_custom_call.1} parent=1 // pred_region
      _
    $region5: #{tpu_custom_call.1} parent=1 // pred_fallthru
      _
    // Predicated region
    $region6: #{tpu_custom_call.1} parent=1 // pred_check
      _
    $region7: #{tpu_custom_call.1} parent=1 // pred_check_branch
      %19 = sbr.rel (0) target = $region9
    $region8: #{tpu_custom_call.1} parent=1 // pred_region
      _
    $region9: #{tpu_custom_call.1} parent=1 // pred_fallthru
      _
    // Predicated region
    $region10: #{tpu_custom_call.1} parent=1 // pred_check
      _
    $region11: #{tpu_custom_call.1} parent=1 // pred_check_branch
      %21 = sbr.rel (0) target = $region13
    $region12: #{tpu_custom_call.1} parent=1 // pred_region
      _
    $region13: #{tpu_custom_call.1} parent=1 // pred_fallthru
      _
    // Predicated region
    $region14: #{tpu_custom_call.1} parent=1 // pred_check
      _
    $region15: #{tpu_custom_call.1} parent=1 // pred_check_branch
      %23 = sbr.rel (0) target = $region17
    $region16: #{tpu_custom_call.1} parent=1 // pred_region
      _
    $region17: #{tpu_custom_call.1} parent=1 // pred_fallthru
      _
    // Predicated region
    $region18: #{tpu_custom_call.1} parent=1 // pred_check
      _
    $region19: #{tpu_custom_call.1} parent=1 // pred_check_branch
      %25 = sbr.rel (0) target = $region21
    $region20: #{tpu_custom_call.1} parent=1 // pred_region
      _
    $region21: #{tpu_custom_call.1} parent=1 // pred_fallthru
      _
    // Predicated region
    $region22: #{tpu_custom_call.1} parent=1 // pred_check
      _
    $region23: #{tpu_custom_call.1} parent=1 // pred_check_branch
      %27 = sbr.rel (0) target = $region25
    $region24: #{tpu_custom_call.1} parent=1 // pred_region
      _
    $region25: #{tpu_custom_call.1} parent=1 // pred_fallthru
      _
    // Predicated region
    $region26: #{tpu_custom_call.1} parent=1 // pred_check
      _
    $region27: #{tpu_custom_call.1} parent=1 // pred_check_branch
      %29 = sbr.rel (0) target = $region29
    $region28: #{tpu_custom_call.1} parent=1 // pred_region
      %s31 = ssub.s32 256, 256
      %32 = vsyncadd [#allocation3], %s31
      %s33 = sshll.u32 [#allocation2], 4
      %s34 = int_to_ptr.vmem [resolvable:$true] %s33
      %39 = dma.hbm_to_vmem [thread:$0]  %s6, 256, %s34, [#allocation3], 128, 128, 8
    $region29: #{tpu_custom_call.1} parent=1 // pred_fallthru
      _
    // Predicated region
    $region30: #{tpu_custom_call.1} parent=1 // pred_check
      _
    $region31: #{tpu_custom_call.1} parent=1 // pred_check_branch
      %41 = sbr.rel (0) target = $region33
    $region32: #{tpu_custom_call.1} parent=1 // pred_region
      _
    $region33: #{tpu_custom_call.1} parent=1 // pred_fallthru
      _
    // Predicated region
    $region34: #{tpu_custom_call.1} parent=1 // pred_check
      _
    $region35: #{tpu_custom_call.1} parent=1 // pred_check_branch
      %43 = sbr.rel (0) target = $region37
    $region36: #{tpu_custom_call.1} parent=1 // pred_region
      %44 = dma.done [#allocation3], 256
    $region37: #{tpu_custom_call.1} parent=1 // pred_fallthru
      _
    %v45 = vld [vmem:[%s0] sm:$0xff]
    %v46 = vld [vmem:[%s0 + $0x8] sm:$0xff]
    %v47 = vld [vmem:[%s7] sm:$0xff]
    %v48 = vld [vmem:[%s7 + $0x8] sm:$0xff]
    %v49 = vld [vmem:[%s7 + $0x10] sm:$0xff]
    %v50 = vld [vmem:[%s7 + $0x18] sm:$0xff]
    %v51 = vld [vmem:[%s1] sm:$0xff]
    %v52 = vld [vmem:[%s1 + $0x8] sm:$0xff]
    %v53 = vld [vmem:[%s1 + $0x10] sm:$0xff]
    %v54 = vld [vmem:[%s1 + $0x18] sm:$0xff]
    %56 = vset.pattern.permute.xlu0 0
    %57 = vperm.xlu0 %56, %v47
    %v58 = vpop.permute.xlu0 %57
    %61 = vset.pattern.permute.xlu0 0
    %62 = vperm.xlu0 %61, %v48
    %v63 = vpop.permute.xlu0 %62
    %66 = vset.pattern.permute.xlu0 0
    %67 = vperm.xlu0 %66, %v49
    %v68 = vpop.permute.xlu0 %67
    %71 = vset.pattern.permute.xlu0 0
    %72 = vperm.xlu0 %71, %v50
    %v73 = vpop.permute.xlu0 %72
    %vm75 = vcmask 130048
    %v77 = vsel %vm75, %v51, 0
    %v80 = vsel %vm75, %v52, 0
    %v83 = vsel %vm75, %v53, 0
    %v86 = vsel %vm75, %v54, 0
    %88 = vmatprep.subr.mxu0 0.0
    %89 = vmatpush1.msra.mxu0 %v45
    %90 = vmatprep.subr.mxu0 0.0
    %91 = vmatpush1.msra.mxu0 %v46
    %92 = vmatprep.subr.mxu0 0.0
    %93 = vmatpush1.msra.mxu0 0.0
    %94 = vmatprep.subr.mxu0 0.0
    %95 = vmatpush1.msra.mxu0 0.0
    %96 = vmatprep.subr.mxu0 0.0
    %97 = vmatpush1.msra.mxu0 0.0
    %98 = vmatprep.subr.mxu0 0.0
    %99 = vmatpush1.msra.mxu0 0.0
    %100 = vmatprep.subr.mxu0 0.0
    %101 = vmatpush1.msra.mxu0 0.0
    %102 = vmatprep.subr.mxu0 0.0
    %103 = vmatpush1.msra.mxu0 0.0
    %104 = vmatprep.subr.mxu0 0.0
    %105 = vmatpush1.msra.mxu0 0.0
    %106 = vmatprep.subr.mxu0 0.0
    %107 = vmatpush1.msra.mxu0 0.0
    %108 = vmatprep.subr.mxu0 0.0
    %109 = vmatpush1.msra.mxu0 0.0
    %110 = vmatprep.subr.mxu0 0.0
    %111 = vmatpush1.msra.mxu0 0.0
    %112 = vmatprep.subr.mxu0 0.0
    %113 = vmatpush1.msra.mxu0 0.0
    %114 = vmatprep.subr.mxu0 0.0
    %115 = vmatpush1.msra.mxu0 0.0
    %116 = vmatprep.subr.mxu0 0.0
    %117 = vmatpush1.msra.mxu0 0.0
    %118 = vmatprep.subr.mxu0 0.0
    %119 = vmatpush1.msra.mxu0 0.0
    %120 = vmatprep.subr.mxu0 0.0
    %121 = vmatpush1.msra.mxu0 0.0
    %122 = vmatprep.subr.mxu0 0.0
    %123 = vmatpush1.msra.mxu0 0.0
    %124 = vmatprep.subr.mxu0 0.0
    %125 = vmatpush1.msra.mxu0 0.0
    %126 = vmatprep.subr.mxu0 0.0
    %127 = vmatpush1.msra.mxu0 0.0
    %128 = vmatprep.subr.mxu0 0.0
    %129 = vmatpush1.msra.mxu0 0.0
    %130 = vmatprep.subr.mxu0 0.0
    %131 = vmatpush1.msra.mxu0 0.0
    %132 = vmatprep.subr.mxu0 0.0
    %133 = vmatpush1.msra.mxu0 0.0
    %134 = vmatprep.subr.mxu0 0.0
    %135 = vmatpush1.msra.mxu0 0.0
    %136 = vmatprep.subr.mxu0 0.0
    %137 = vmatpush1.msra.mxu0 0.0
    %138 = vmatprep.subr.mxu0 0.0
    %139 = vmatpush1.msra.mxu0 0.0
    %140 = vmatprep.subr.mxu0 0.0
    %141 = vmatpush1.msra.mxu0 0.0
    %142 = vmatprep.subr.mxu0 0.0
    %143 = vmatpush1.msra.mxu0 0.0
    %144 = vmatprep.subr.mxu0 0.0
    %145 = vmatpush1.msra.mxu0 0.0
    %146 = vmatprep.subr.mxu0 0.0
    %147 = vmatpush1.msra.mxu0 0.0
    %148 = vmatprep.subr.mxu0 0.0
    %149 = vmatpush1.msra.mxu0 0.0
    %150 = vmatprep.subr.mxu0 0.0
    %151 = vmatpush1.msra.mxu0 0.0
    %152 = vmatprep.mubr.f32.mxu0 0.0
    %153 = vmatmul.mubr.f32.gmra.mrb[0].mxu0 %v77
    %v154 = vpop.f32.mrb[0].mxu0
    %v155 = vadd.f32 %v58, %v154
    %v156 = vpop.f32.mrb[0].mxu0
    %157 = vmatprep.mubr.f32.mxu0 0.0
    %158 = vmatmul.mubr.f32.gmra.mrb[0].mxu0 %v80
    %v159 = vpop.f32.mrb[0].mxu0
    %v160 = vadd.f32 %v63, %v159
    %v161 = vpop.f32.mrb[0].mxu0
    %162 = vmatprep.mubr.f32.mxu0 0.0
    %163 = vmatmul.mubr.f32.gmra.mrb[0].mxu0 %v83
    %v164 = vpop.f32.mrb[0].mxu0
    %v165 = vadd.f32 %v68, %v164
    %v166 = vpop.f32.mrb[0].mxu0
    %167 = vmatprep.mubr.f32.mxu0 0.0
    %168 = vmatmul.mubr.f32.gmra.mrb[0].mxu0 %v86
    %v169 = vpop.f32.mrb[0].mxu0
    %v170 = vadd.f32 %v73, %v169
    %v171 = vpop.f32.mrb[0].mxu0
    %172 = vdwg.mxu0
    %v173 = vmax.f32 %v155, 0.0
    %v174 = vmax.f32 %v160, 0.0
    %v175 = vmax.f32 %v165, 0.0
    %v176 = vmax.f32 %v170, 0.0
    %v177 = vld [vmem:[%s2] sm:$0xff]
    %v178 = vld [vmem:[%s2 + $0x8] sm:$0xff]
    %v179 = vld [vmem:[%s2 + $0x10] sm:$0xff]
    %v180 = vld [vmem:[%s2 + $0x18] sm:$0xff]
    %181 = vset.pattern.permute.xlu0 1
    %182 = vperm.xlu0 %181, %v47
    %v183 = vpop.permute.xlu0 %182
    %185 = vset.pattern.permute.xlu0 1
    %186 = vperm.xlu0 %185, %v48
    %v187 = vpop.permute.xlu0 %186
    %189 = vset.pattern.permute.xlu0 1
    %190 = vperm.xlu0 %189, %v49
    %v191 = vpop.permute.xlu0 %190
    %193 = vset.pattern.permute.xlu0 1
    %194 = vperm.xlu0 %193, %v50
    %v195 = vpop.permute.xlu0 %194
    %vm197 = vcmask 261120
    %v199 = vsel %vm197, %v177, 0
    %v202 = vsel %vm197, %v178, 0
    %v205 = vsel %vm197, %v179, 0
    %v208 = vsel %vm197, %v180, 0
    %210 = vmatprep.subr.mxu0 0.0
    %211 = vmatpush1.msra.mxu0 %v173
    %212 = vmatprep.subr.mxu0 0.0
    %213 = vmatpush1.msra.mxu0 %v174
    %214 = vmatprep.subr.mxu0 0.0
    %215 = vmatpush1.msra.mxu0 %v175
    %216 = vmatprep.subr.mxu0 0.0
    %217 = vmatpush1.msra.mxu0 %v176
    %218 = vmatprep.subr.mxu0 0.0
    %219 = vmatpush1.msra.mxu0 0.0
    %220 = vmatprep.subr.mxu0 0.0
    %221 = vmatpush1.msra.mxu0 0.0
    %222 = vmatprep.subr.mxu0 0.0
    %223 = vmatpush1.msra.mxu0 0.0
    %224 = vmatprep.subr.mxu0 0.0
    %225 = vmatpush1.msra.mxu0 0.0
    %226 = vmatprep.subr.mxu0 0.0
    %227 = vmatpush1.msra.mxu0 0.0
    %228 = vmatprep.subr.mxu0 0.0
    %229 = vmatpush1.msra.mxu0 0.0
    %230 = vmatprep.subr.mxu0 0.0
    %231 = vmatpush1.msra.mxu0 0.0
    %232 = vmatprep.subr.mxu0 0.0
    %233 = vmatpush1.msra.mxu0 0.0
    %234 = vmatprep.subr.mxu0 0.0
    %235 = vmatpush1.msra.mxu0 0.0
    %236 = vmatprep.subr.mxu0 0.0
    %237 = vmatpush1.msra.mxu0 0.0
    %238 = vmatprep.subr.mxu0 0.0
    %239 = vmatpush1.msra.mxu0 0.0
    %240 = vmatprep.subr.mxu0 0.0
    %241 = vmatpush1.msra.mxu0 0.0
    %242 = vmatprep.subr.mxu0 0.0
    %243 = vmatpush1.msra.mxu0 0.0
    %244 = vmatprep.subr.mxu0 0.0
    %245 = vmatpush1.msra.mxu0 0.0
    %246 = vmatprep.subr.mxu0 0.0
    %247 = vmatpush1.msra.mxu0 0.0
    %248 = vmatprep.subr.mxu0 0.0
    %249 = vmatpush1.msra.mxu0 0.0
    %250 = vmatprep.subr.mxu0 0.0
    %251 = vmatpush1.msra.mxu0 0.0
    %252 = vmatprep.subr.mxu0 0.0
    %253 = vmatpush1.msra.mxu0 0.0
    %254 = vmatprep.subr.mxu0 0.0
    %255 = vmatpush1.msra.mxu0 0.0
    %256 = vmatprep.subr.mxu0 0.0
    %257 = vmatpush1.msra.mxu0 0.0
    %258 = vmatprep.subr.mxu0 0.0
    %259 = vmatpush1.msra.mxu0 0.0
    %260 = vmatprep.subr.mxu0 0.0
    %261 = vmatpush1.msra.mxu0 0.0
    %262 = vmatprep.subr.mxu0 0.0
    %263 = vmatpush1.msra.mxu0 0.0
    %264 = vmatprep.subr.mxu0 0.0
    %265 = vmatpush1.msra.mxu0 0.0
    %266 = vmatprep.subr.mxu0 0.0
    %267 = vmatpush1.msra.mxu0 0.0
    %268 = vmatprep.subr.mxu0 0.0
    %269 = vmatpush1.msra.mxu0 0.0
    %270 = vmatprep.subr.mxu0 0.0
    %271 = vmatpush1.msra.mxu0 0.0
    %272 = vmatprep.subr.mxu0 0.0
    %273 = vmatpush1.msra.mxu0 0.0
    %274 = vmatprep.mubr.f32.mxu0 0.0
    %275 = vmatmul.mubr.f32.gmra.mrb[0].mxu0 %v199
    %v276 = vpop.f32.mrb[0].mxu0
    %v277 = vadd.f32 %v183, %v276
    %v278 = vpop.f32.mrb[0].mxu0
    %279 = vmatprep.mubr.f32.mxu0 0.0
    %280 = vmatmul.mubr.f32.gmra.mrb[0].mxu0 %v202
    %v281 = vpop.f32.mrb[0].mxu0
    %v282 = vadd.f32 %v187, %v281
    %v283 = vpop.f32.mrb[0].mxu0
    %284 = vmatprep.mubr.f32.mxu0 0.0
    %285 = vmatmul.mubr.f32.gmra.mrb[0].mxu0 %v205
    %v286 = vpop.f32.mrb[0].mxu0
    %v287 = vadd.f32 %v191, %v286
    %v288 = vpop.f32.mrb[0].mxu0
    %289 = vmatprep.mubr.f32.mxu0 0.0
    %290 = vmatmul.mubr.f32.gmra.mrb[0].mxu0 %v208
    %v291 = vpop.f32.mrb[0].mxu0
    %v292 = vadd.f32 %v195, %v291
    %v293 = vpop.f32.mrb[0].mxu0
    %294 = vdwg.mxu0
    %v295 = vmax.f32 %v277, 0.0
    %v296 = vmax.f32 %v282, 0.0
    %v297 = vmax.f32 %v287, 0.0
    %v298 = vmax.f32 %v292, 0.0
    %299 = vmatprep.subr.mxu0 0.0
    %300 = vmatpush1.msra.mxu0 %v295
    %301 = vmatprep.subr.mxu0 0.0
    %302 = vmatpush1.msra.mxu0 %v296
    %303 = vmatprep.subr.mxu0 0.0
    %304 = vmatpush1.msra.mxu0 %v297
    %305 = vmatprep.subr.mxu0 0.0
    %306 = vmatpush1.msra.mxu0 %v298
    %307 = vmatprep.subr.mxu0 0.0
    %308 = vmatpush1.msra.mxu0 0.0
    %309 = vmatprep.subr.mxu0 0.0
    %310 = vmatpush1.msra.mxu0 0.0
    %311 = vmatprep.subr.mxu0 0.0
    %312 = vmatpush1.msra.mxu0 0.0
    %313 = vmatprep.subr.mxu0 0.0
    %314 = vmatpush1.msra.mxu0 0.0
    %315 = vmatprep.subr.mxu0 0.0
    %316 = vmatpush1.msra.mxu0 0.0
    %317 = vmatprep.subr.mxu0 0.0
    %318 = vmatpush1.msra.mxu0 0.0
    %319 = vmatprep.subr.mxu0 0.0
    %320 = vmatpush1.msra.mxu0 0.0
    %321 = vmatprep.subr.mxu0 0.0
    %322 = vmatpush1.msra.mxu0 0.0
    %323 = vmatprep.subr.mxu0 0.0
    %324 = vmatpush1.msra.mxu0 0.0
    %325 = vmatprep.subr.mxu0 0.0
    %326 = vmatpush1.msra.mxu0 0.0
    %327 = vmatprep.subr.mxu0 0.0
    %328 = vmatpush1.msra.mxu0 0.0
    %329 = vmatprep.subr.mxu0 0.0
    %330 = vmatpush1.msra.mxu0 0.0
    %331 = vmatprep.subr.mxu0 0.0
    %332 = vmatpush1.msra.mxu0 0.0
    %333 = vmatprep.subr.mxu0 0.0
    %334 = vmatpush1.msra.mxu0 0.0
    %335 = vmatprep.subr.mxu0 0.0
    %336 = vmatpush1.msra.mxu0 0.0
    %337 = vmatprep.subr.mxu0 0.0
    %338 = vmatpush1.msra.mxu0 0.0
    %339 = vmatprep.subr.mxu0 0.0
    %340 = vmatpush1.msra.mxu0 0.0
    %341 = vmatprep.subr.mxu0 0.0
    %342 = vmatpush1.msra.mxu0 0.0
    %343 = vmatprep.subr.mxu0 0.0
    %344 = vmatpush1.msra.mxu0 0.0
    %345 = vmatprep.subr.mxu0 0.0
    %346 = vmatpush1.msra.mxu0 0.0
    %347 = vmatprep.subr.mxu0 0.0
    %348 = vmatpush1.msra.mxu0 0.0
    %349 = vmatprep.subr.mxu0 0.0
    %350 = vmatpush1.msra.mxu0 0.0
    %351 = vmatprep.subr.mxu0 0.0
    %352 = vmatpush1.msra.mxu0 0.0
    %353 = vmatprep.subr.mxu0 0.0
    %354 = vmatpush1.msra.mxu0 0.0
    %355 = vmatprep.subr.mxu0 0.0
    %356 = vmatpush1.msra.mxu0 0.0
    %357 = vmatprep.subr.mxu0 0.0
    %358 = vmatpush1.msra.mxu0 0.0
    %359 = vmatprep.subr.mxu0 0.0
    %360 = vmatpush1.msra.mxu0 0.0
    %361 = vmatprep.subr.mxu0 0.0
    %362 = vmatpush1.msra.mxu0 0.0
    %363 = vmatprep.mubr.f32.mxu0 0.0
    %364 = vmatmul.mubr.f32.gmra.mrb[0].mxu0 %v199
    %v365 = vpop.f32.mrb[0].mxu0
    %v366 = vadd.f32 %v183, %v365
    %v367 = vpop.f32.mrb[0].mxu0
    %368 = vmatprep.mubr.f32.mxu0 0.0
    %369 = vmatmul.mubr.f32.gmra.mrb[0].mxu0 %v202
    %v370 = vpop.f32.mrb[0].mxu0
    %v371 = vadd.f32 %v187, %v370
    %v372 = vpop.f32.mrb[0].mxu0
    %373 = vmatprep.mubr.f32.mxu0 0.0
    %374 = vmatmul.mubr.f32.gmra.mrb[0].mxu0 %v205
    %v375 = vpop.f32.mrb[0].mxu0
    %v376 = vadd.f32 %v191, %v375
    %v377 = vpop.f32.mrb[0].mxu0
    %378 = vmatprep.mubr.f32.mxu0 0.0
    %379 = vmatmul.mubr.f32.gmra.mrb[0].mxu0 %v208
    %v380 = vpop.f32.mrb[0].mxu0
    %v381 = vadd.f32 %v195, %v380
    %v382 = vpop.f32.mrb[0].mxu0
    %383 = vdwg.mxu0
    %v384 = vmax.f32 %v366, 0.0
    %v385 = vmax.f32 %v371, 0.0
    %v386 = vmax.f32 %v376, 0.0
    %v387 = vmax.f32 %v381, 0.0
    %v388 = vld [vmem:[%s3] sm:$0xff]
    %v389 = vld [vmem:[%s3 + $0x8] sm:$0xff]
    %v390 = vld [vmem:[%s3 + $0x10] sm:$0xff]
    %v391 = vld [vmem:[%s3 + $0x18] sm:$0xff]
    %392 = vset.pattern.permute.xlu0 2
    %393 = vperm.xlu0 %392, %v47
    %v394 = vpop.permute.xlu0 %393
    %396 = vset.pattern.permute.xlu0 2
    %397 = vperm.xlu0 %396, %v48
    %v398 = vpop.permute.xlu0 %397
    %400 = vset.pattern.permute.xlu0 2
    %401 = vperm.xlu0 %400, %v49
    %v402 = vpop.permute.xlu0 %401
    %404 = vset.pattern.permute.xlu0 2
    %405 = vperm.xlu0 %404, %v50
    %v406 = vpop.permute.xlu0 %405
    %v409 = vsel %vm197, %v388, 0
    %v412 = vsel %vm197, %v389, 0
    %v415 = vsel %vm197, %v390, 0
    %v418 = vsel %vm197, %v391, 0
    %420 = vmatprep.subr.mxu0 0.0
    %421 = vmatpush1.msra.mxu0 %v384
    %422 = vmatprep.subr.mxu0 0.0
    %423 = vmatpush1.msra.mxu0 %v385
    %424 = vmatprep.subr.mxu0 0.0
    %425 = vmatpush1.msra.mxu0 %v386
    %426 = vmatprep.subr.mxu0 0.0
    %427 = vmatpush1.msra.mxu0 %v387
    %428 = vmatprep.subr.mxu0 0.0
    %429 = vmatpush1.msra.mxu0 0.0
    %430 = vmatprep.subr.mxu0 0.0
    %431 = vmatpush1.msra.mxu0 0.0
    %432 = vmatprep.subr.mxu0 0.0
    %433 = vmatpush1.msra.mxu0 0.0
    %434 = vmatprep.subr.mxu0 0.0
    %435 = vmatpush1.msra.mxu0 0.0
    %436 = vmatprep.subr.mxu0 0.0
    %437 = vmatpush1.msra.mxu0 0.0
    %438 = vmatprep.subr.mxu0 0.0
    %439 = vmatpush1.msra.mxu0 0.0
    %440 = vmatprep.subr.mxu0 0.0
    %441 = vmatpush1.msra.mxu0 0.0
    %442 = vmatprep.subr.mxu0 0.0
    %443 = vmatpush1.msra.mxu0 0.0
    %444 = vmatprep.subr.mxu0 0.0
    %445 = vmatpush1.msra.mxu0 0.0
    %446 = vmatprep.subr.mxu0 0.0
    %447 = vmatpush1.msra.mxu0 0.0
    %448 = vmatprep.subr.mxu0 0.0
    %449 = vmatpush1.msra.mxu0 0.0
    %450 = vmatprep.subr.mxu0 0.0
    %451 = vmatpush1.msra.mxu0 0.0
    %452 = vmatprep.subr.mxu0 0.0
    %453 = vmatpush1.msra.mxu0 0.0
    %454 = vmatprep.subr.mxu0 0.0
    %455 = vmatpush1.msra.mxu0 0.0
    %456 = vmatprep.subr.mxu0 0.0
    %457 = vmatpush1.msra.mxu0 0.0
    %458 = vmatprep.subr.mxu0 0.0
    %459 = vmatpush1.msra.mxu0 0.0
    %460 = vmatprep.subr.mxu0 0.0
    %461 = vmatpush1.msra.mxu0 0.0
    %462 = vmatprep.subr.mxu0 0.0
    %463 = vmatpush1.msra.mxu0 0.0
    %464 = vmatprep.subr.mxu0 0.0
    %465 = vmatpush1.msra.mxu0 0.0
    %466 = vmatprep.subr.mxu0 0.0
    %467 = vmatpush1.msra.mxu0 0.0
    %468 = vmatprep.subr.mxu0 0.0
    %469 = vmatpush1.msra.mxu0 0.0
    %470 = vmatprep.subr.mxu0 0.0
    %471 = vmatpush1.msra.mxu0 0.0
    %472 = vmatprep.subr.mxu0 0.0
    %473 = vmatpush1.msra.mxu0 0.0
    %474 = vmatprep.subr.mxu0 0.0
    %475 = vmatpush1.msra.mxu0 0.0
    %476 = vmatprep.subr.mxu0 0.0
    %477 = vmatpush1.msra.mxu0 0.0
    %478 = vmatprep.subr.mxu0 0.0
    %479 = vmatpush1.msra.mxu0 0.0
    %480 = vmatprep.subr.mxu0 0.0
    %481 = vmatpush1.msra.mxu0 0.0
    %482 = vmatprep.subr.mxu0 0.0
    %483 = vmatpush1.msra.mxu0 0.0
    %484 = vmatprep.mubr.f32.mxu0 0.0
    %485 = vmatmul.mubr.f32.gmra.mrb[0].mxu0 %v409
    %v486 = vpop.f32.mrb[0].mxu0
    %v487 = vadd.f32 %v394, %v486
    %v488 = vpop.f32.mrb[0].mxu0
    %489 = vmatprep.mubr.f32.mxu0 0.0
    %490 = vmatmul.mubr.f32.gmra.mrb[0].mxu0 %v412
    %v491 = vpop.f32.mrb[0].mxu0
    %v492 = vadd.f32 %v398, %v491
    %v493 = vpop.f32.mrb[0].mxu0
    %494 = vmatprep.mubr.f32.mxu0 0.0
    %495 = vmatmul.mubr.f32.gmra.mrb[0].mxu0 %v415
    %v496 = vpop.f32.mrb[0].mxu0
    %v497 = vadd.f32 %v402, %v496
    %v498 = vpop.f32.mrb[0].mxu0
    %499 = vmatprep.mubr.f32.mxu0 0.0
    %500 = vmatmul.mubr.f32.gmra.mrb[0].mxu0 %v418
    %v501 = vpop.f32.mrb[0].mxu0
    %v502 = vadd.f32 %v406, %v501
    %v503 = vpop.f32.mrb[0].mxu0
    %504 = vdwg.mxu0
    %vm505 = vcmask 64512
    %v506 = vsel %vm505, %v487, -inf
    %v507 = vrot.slane %v506, 4
    %v508 = vmax.f32 %v506, %v507
    %v509 = vrot.slane %v508, 2
    %v510 = vmax.f32 %v508, %v509
    %v511 = vrot.slane %v510, 1
    %v512 = vmax.f32 %v510, %v511
    %v513 = vsub.f32 %v487, %v512
    %v514 = vmul.f32 %v513, 1.442695
    %v515 = vpow.pop %v514
    %v516 = vsel %vm505, %v515, 0.0
    %v517 = vrot.slane %v516, 4
    %v518 = vadd.f32 %v516, %v517
    %v519 = vrot.slane %v518, 2
    %v520 = vadd.f32 %v518, %v519
    %v521 = vrot.slane %v520, 1
    %v522 = vadd.f32 %v520, %v521
    %v523 = vrcp.pop %v522
    %v524 = vmul.f32 %v515, %v523
    %v525 = vsel %vm505, %v492, -inf
    %v526 = vrot.slane %v525, 4
    %v527 = vmax.f32 %v525, %v526
    %v528 = vrot.slane %v527, 2
    %v529 = vmax.f32 %v527, %v528
    %v530 = vrot.slane %v529, 1
    %v531 = vmax.f32 %v529, %v530
    %v532 = vsub.f32 %v492, %v531
    %v533 = vmul.f32 %v532, 1.442695
    %v534 = vpow.pop %v533
    %v535 = vsel %vm505, %v534, 0.0
    %v536 = vrot.slane %v535, 4
    %v537 = vadd.f32 %v535, %v536
    %v538 = vrot.slane %v537, 2
    %v539 = vadd.f32 %v537, %v538
    %v540 = vrot.slane %v539, 1
    %v541 = vadd.f32 %v539, %v540
    %v542 = vrcp.pop %v541
    %v543 = vmul.f32 %v534, %v542
    %v544 = vsel %vm505, %v497, -inf
    %v545 = vrot.slane %v544, 4
    %v546 = vmax.f32 %v544, %v545
    %v547 = vrot.slane %v546, 2
    %v548 = vmax.f32 %v546, %v547
    %v549 = vrot.slane %v548, 1
    %v550 = vmax.f32 %v548, %v549
    %v551 = vsub.f32 %v497, %v550
    %v552 = vmul.f32 %v551, 1.442695
    %v553 = vpow.pop %v552
    %v554 = vsel %vm505, %v553, 0.0
    %v555 = vrot.slane %v554, 4
    %v556 = vadd.f32 %v554, %v555
    %v557 = vrot.slane %v556, 2
    %v558 = vadd.f32 %v556, %v557
    %v559 = vrot.slane %v558, 1
    %v560 = vadd.f32 %v558, %v559
    %v561 = vrcp.pop %v560
    %v562 = vmul.f32 %v553, %v561
    %v563 = vsel %vm505, %v502, -inf
    %v564 = vrot.slane %v563, 4
    %v565 = vmax.f32 %v563, %v564
    %v566 = vrot.slane %v565, 2
    %v567 = vmax.f32 %v565, %v566
    %v568 = vrot.slane %v567, 1
    %v569 = vmax.f32 %v567, %v568
    %v570 = vsub.f32 %v502, %v569
    %v571 = vmul.f32 %v570, 1.442695
    %v572 = vpow.pop %v571
    %v573 = vsel %vm505, %v572, 0.0
    %v574 = vrot.slane %v573, 4
    %v575 = vadd.f32 %v573, %v574
    %v576 = vrot.slane %v575, 2
    %v577 = vadd.f32 %v575, %v576
    %v578 = vrot.slane %v577, 1
    %v579 = vadd.f32 %v577, %v578
    %v580 = vrcp.pop %v579
    %v581 = vmul.f32 %v572, %v580
    %582 = vst.msk [vmem:[%s9] sm:$0xff] %vm505, %v524
    %583 = vst.msk [vmem:[%s9 + $0x8] sm:$0xff] %vm505, %v543
    %584 = vst.msk [vmem:[%s9 + $0x10] sm:$0xff] %vm505, %v562
    %585 = vst.msk [vmem:[%s9 + $0x18] sm:$0xff] %vm505, %v581
    %v586 = vld [vmem:[%s4] sm:$0xff]
    %v587 = vld [vmem:[%s4 + $0x8] sm:$0xff]
    %v588 = vld [vmem:[%s4 + $0x10] sm:$0xff]
    %v589 = vld [vmem:[%s4 + $0x18] sm:$0xff]
    %590 = vset.pattern.permute.xlu0 3
    %591 = vperm.xlu0 %590, %v47
    %v592 = vpop.permute.xlu0 %591
    %594 = vset.pattern.permute.xlu0 3
    %595 = vperm.xlu0 %594, %v48
    %v596 = vpop.permute.xlu0 %595
    %598 = vset.pattern.permute.xlu0 3
    %599 = vperm.xlu0 %598, %v49
    %v600 = vpop.permute.xlu0 %599
    %602 = vset.pattern.permute.xlu0 3
    %603 = vperm.xlu0 %602, %v50
    %v604 = vpop.permute.xlu0 %603
    %v607 = vsel %vm197, %v586, 0
    %v610 = vsel %vm197, %v587, 0
    %v613 = vsel %vm197, %v588, 0
    %v616 = vsel %vm197, %v589, 0
    %618 = vmatprep.subr.mxu0 0.0
    %619 = vmatpush1.msra.mxu0 %v524
    %620 = vmatprep.subr.mxu0 0.0
    %621 = vmatpush1.msra.mxu0 %v543
    %622 = vmatprep.subr.mxu0 0.0
    %623 = vmatpush1.msra.mxu0 %v562
    %624 = vmatprep.subr.mxu0 0.0
    %625 = vmatpush1.msra.mxu0 %v581
    %626 = vmatprep.subr.mxu0 0.0
    %627 = vmatpush1.msra.mxu0 0.0
    %628 = vmatprep.subr.mxu0 0.0
    %629 = vmatpush1.msra.mxu0 0.0
    %630 = vmatprep.subr.mxu0 0.0
    %631 = vmatpush1.msra.mxu0 0.0
    %632 = vmatprep.subr.mxu0 0.0
    %633 = vmatpush1.msra.mxu0 0.0
    %634 = vmatprep.subr.mxu0 0.0
    %635 = vmatpush1.msra.mxu0 0.0
    %636 = vmatprep.subr.mxu0 0.0
    %637 = vmatpush1.msra.mxu0 0.0
    %638 = vmatprep.subr.mxu0 0.0
    %639 = vmatpush1.msra.mxu0 0.0
    %640 = vmatprep.subr.mxu0 0.0
    %641 = vmatpush1.msra.mxu0 0.0
    %642 = vmatprep.subr.mxu0 0.0
    %643 = vmatpush1.msra.mxu0 0.0
    %644 = vmatprep.subr.mxu0 0.0
    %645 = vmatpush1.msra.mxu0 0.0
    %646 = vmatprep.subr.mxu0 0.0
    %647 = vmatpush1.msra.mxu0 0.0
    %648 = vmatprep.subr.mxu0 0.0
    %649 = vmatpush1.msra.mxu0 0.0
    %650 = vmatprep.subr.mxu0 0.0
    %651 = vmatpush1.msra.mxu0 0.0
    %652 = vmatprep.subr.mxu0 0.0
    %653 = vmatpush1.msra.mxu0 0.0
    %654 = vmatprep.subr.mxu0 0.0
    %655 = vmatpush1.msra.mxu0 0.0
    %656 = vmatprep.subr.mxu0 0.0
    %657 = vmatpush1.msra.mxu0 0.0
    %658 = vmatprep.subr.mxu0 0.0
    %659 = vmatpush1.msra.mxu0 0.0
    %660 = vmatprep.subr.mxu0 0.0
    %661 = vmatpush1.msra.mxu0 0.0
    %662 = vmatprep.subr.mxu0 0.0
    %663 = vmatpush1.msra.mxu0 0.0
    %664 = vmatprep.subr.mxu0 0.0
    %665 = vmatpush1.msra.mxu0 0.0
    %666 = vmatprep.subr.mxu0 0.0
    %667 = vmatpush1.msra.mxu0 0.0
    %668 = vmatprep.subr.mxu0 0.0
    %669 = vmatpush1.msra.mxu0 0.0
    %670 = vmatprep.subr.mxu0 0.0
    %671 = vmatpush1.msra.mxu0 0.0
    %672 = vmatprep.subr.mxu0 0.0
    %673 = vmatpush1.msra.mxu0 0.0
    %674 = vmatprep.subr.mxu0 0.0
    %675 = vmatpush1.msra.mxu0 0.0
    %676 = vmatprep.subr.mxu0 0.0
    %677 = vmatpush1.msra.mxu0 0.0
    %678 = vmatprep.subr.mxu0 0.0
    %679 = vmatpush1.msra.mxu0 0.0
    %680 = vmatprep.subr.mxu0 0.0
    %681 = vmatpush1.msra.mxu0 0.0
    %682 = vmatprep.mubr.f32.mxu0 0.0
    %683 = vmatmul.mubr.f32.gmra.mrb[0].mxu0 %v607
    %v684 = vpop.f32.mrb[0].mxu0
    %v685 = vadd.f32 %v592, %v684
    %v686 = vpop.f32.mrb[0].mxu0
    %687 = vmatprep.mubr.f32.mxu0 0.0
    %688 = vmatmul.mubr.f32.gmra.mrb[0].mxu0 %v610
    %v689 = vpop.f32.mrb[0].mxu0
    %v690 = vadd.f32 %v596, %v689
    %v691 = vpop.f32.mrb[0].mxu0
    %692 = vmatprep.mubr.f32.mxu0 0.0
    %693 = vmatmul.mubr.f32.gmra.mrb[0].mxu0 %v613
    %v694 = vpop.f32.mrb[0].mxu0
    %v695 = vadd.f32 %v600, %v694
    %v696 = vpop.f32.mrb[0].mxu0
    %697 = vmatprep.mubr.f32.mxu0 0.0
    %698 = vmatmul.mubr.f32.gmra.mrb[0].mxu0 %v616
    %v699 = vpop.f32.mrb[0].mxu0
    %v700 = vadd.f32 %v604, %v699
    %v701 = vpop.f32.mrb[0].mxu0
    %702 = vdwg.mxu0
    %v703 = vmax.f32 %v685, 0.0
    %v704 = vmax.f32 %v690, 0.0
    %v705 = vmax.f32 %v695, 0.0
    %v706 = vmax.f32 %v700, 0.0
    %v707 = vld [vmem:[%s5] sm:$0xff]
    %v708 = vld [vmem:[%s5 + $0x8] sm:$0xff]
    %v709 = vld [vmem:[%s5 + $0x10] sm:$0xff]
    %v710 = vld [vmem:[%s5 + $0x18] sm:$0xff]
    %711 = vset.pattern.permute.xlu0 4
    %712 = vperm.xlu0 %711, %v47
    %v713 = vpop.permute.xlu0 %712
    %715 = vset.pattern.permute.xlu0 4
    %716 = vperm.xlu0 %715, %v48
    %v717 = vpop.permute.xlu0 %716
    %719 = vset.pattern.permute.xlu0 4
    %720 = vperm.xlu0 %719, %v49
    %v721 = vpop.permute.xlu0 %720
    %723 = vset.pattern.permute.xlu0 4
    %724 = vperm.xlu0 %723, %v50
    %v725 = vpop.permute.xlu0 %724
    %v728 = vsel %vm197, %v707, 0
    %v731 = vsel %vm197, %v708, 0
    %v734 = vsel %vm197, %v709, 0
    %v737 = vsel %vm197, %v710, 0
    %739 = vmatprep.subr.mxu0 0.0
    %740 = vmatpush1.msra.mxu0 %v703
    %741 = vmatprep.subr.mxu0 0.0
    %742 = vmatpush1.msra.mxu0 %v704
    %743 = vmatprep.subr.mxu0 0.0
    %744 = vmatpush1.msra.mxu0 %v705
    %745 = vmatprep.subr.mxu0 0.0
    %746 = vmatpush1.msra.mxu0 %v706
    %747 = vmatprep.subr.mxu0 0.0
    %748 = vmatpush1.msra.mxu0 0.0
    %749 = vmatprep.subr.mxu0 0.0
    %750 = vmatpush1.msra.mxu0 0.0
    %751 = vmatprep.subr.mxu0 0.0
    %752 = vmatpush1.msra.mxu0 0.0
    %753 = vmatprep.subr.mxu0 0.0
    %754 = vmatpush1.msra.mxu0 0.0
    %755 = vmatprep.subr.mxu0 0.0
    %756 = vmatpush1.msra.mxu0 0.0
    %757 = vmatprep.subr.mxu0 0.0
    %758 = vmatpush1.msra.mxu0 0.0
    %759 = vmatprep.subr.mxu0 0.0
    %760 = vmatpush1.msra.mxu0 0.0
    %761 = vmatprep.subr.mxu0 0.0
    %762 = vmatpush1.msra.mxu0 0.0
    %763 = vmatprep.subr.mxu0 0.0
    %764 = vmatpush1.msra.mxu0 0.0
    %765 = vmatprep.subr.mxu0 0.0
    %766 = vmatpush1.msra.mxu0 0.0
    %767 = vmatprep.subr.mxu0 0.0
    %768 = vmatpush1.msra.mxu0 0.0
    %769 = vmatprep.subr.mxu0 0.0
    %770 = vmatpush1.msra.mxu0 0.0
    %771 = vmatprep.subr.mxu0 0.0
    %772 = vmatpush1.msra.mxu0 0.0
    %773 = vmatprep.subr.mxu0 0.0
    %774 = vmatpush1.msra.mxu0 0.0
    %775 = vmatprep.subr.mxu0 0.0
    %776 = vmatpush1.msra.mxu0 0.0
    %777 = vmatprep.subr.mxu0 0.0
    %778 = vmatpush1.msra.mxu0 0.0
    %779 = vmatprep.subr.mxu0 0.0
    %780 = vmatpush1.msra.mxu0 0.0
    %781 = vmatprep.subr.mxu0 0.0
    %782 = vmatpush1.msra.mxu0 0.0
    %783 = vmatprep.subr.mxu0 0.0
    %784 = vmatpush1.msra.mxu0 0.0
    %785 = vmatprep.subr.mxu0 0.0
    %786 = vmatpush1.msra.mxu0 0.0
    %787 = vmatprep.subr.mxu0 0.0
    %788 = vmatpush1.msra.mxu0 0.0
    %789 = vmatprep.subr.mxu0 0.0
    %790 = vmatpush1.msra.mxu0 0.0
    %791 = vmatprep.subr.mxu0 0.0
    %792 = vmatpush1.msra.mxu0 0.0
    %793 = vmatprep.subr.mxu0 0.0
    %794 = vmatpush1.msra.mxu0 0.0
    %795 = vmatprep.subr.mxu0 0.0
    %796 = vmatpush1.msra.mxu0 0.0
    %797 = vmatprep.subr.mxu0 0.0
    %798 = vmatpush1.msra.mxu0 0.0
    %799 = vmatprep.subr.mxu0 0.0
    %800 = vmatpush1.msra.mxu0 0.0
    %801 = vmatprep.subr.mxu0 0.0
    %802 = vmatpush1.msra.mxu0 0.0
    %803 = vmatprep.mubr.f32.mxu0 0.0
    %804 = vmatmul.mubr.f32.gmra.mrb[0].mxu0 %v728
    %v805 = vpop.f32.mrb[0].mxu0
    %v806 = vadd.f32 %v713, %v805
    %v807 = vpop.f32.mrb[0].mxu0
    %808 = vmatprep.mubr.f32.mxu0 0.0
    %809 = vmatmul.mubr.f32.gmra.mrb[0].mxu0 %v731
    %v810 = vpop.f32.mrb[0].mxu0
    %v811 = vadd.f32 %v717, %v810
    %v812 = vpop.f32.mrb[0].mxu0
    %813 = vmatprep.mubr.f32.mxu0 0.0
    %814 = vmatmul.mubr.f32.gmra.mrb[0].mxu0 %v734
    %v815 = vpop.f32.mrb[0].mxu0
    %v816 = vadd.f32 %v721, %v815
    %v817 = vpop.f32.mrb[0].mxu0
    %818 = vmatprep.mubr.f32.mxu0 0.0
    %819 = vmatmul.mubr.f32.gmra.mrb[0].mxu0 %v737
    %v820 = vpop.f32.mrb[0].mxu0
    %v821 = vadd.f32 %v725, %v820
    %v822 = vpop.f32.mrb[0].mxu0
    %823 = vdwg.mxu0
    %v824 = vmax.f32 %v806, 0.0
    %v825 = vmax.f32 %v811, 0.0
    %v826 = vmax.f32 %v816, 0.0
    %v827 = vmax.f32 %v821, 0.0
    %828 = vmatprep.subr.mxu0 0.0
    %829 = vmatpush1.msra.mxu0 %v824
    %830 = vmatprep.subr.mxu0 0.0
    %831 = vmatpush1.msra.mxu0 %v825
    %832 = vmatprep.subr.mxu0 0.0
    %833 = vmatpush1.msra.mxu0 %v826
    %834 = vmatprep.subr.mxu0 0.0
    %835 = vmatpush1.msra.mxu0 %v827
    %836 = vmatprep.subr.mxu0 0.0
    %837 = vmatpush1.msra.mxu0 0.0
    %838 = vmatprep.subr.mxu0 0.0
    %839 = vmatpush1.msra.mxu0 0.0
    %840 = vmatprep.subr.mxu0 0.0
    %841 = vmatpush1.msra.mxu0 0.0
    %842 = vmatprep.subr.mxu0 0.0
    %843 = vmatpush1.msra.mxu0 0.0
    %844 = vmatprep.subr.mxu0 0.0
    %845 = vmatpush1.msra.mxu0 0.0
    %846 = vmatprep.subr.mxu0 0.0
    %847 = vmatpush1.msra.mxu0 0.0
    %848 = vmatprep.subr.mxu0 0.0
    %849 = vmatpush1.msra.mxu0 0.0
    %850 = vmatprep.subr.mxu0 0.0
    %851 = vmatpush1.msra.mxu0 0.0
    %852 = vmatprep.subr.mxu0 0.0
    %853 = vmatpush1.msra.mxu0 0.0
    %854 = vmatprep.subr.mxu0 0.0
    %855 = vmatpush1.msra.mxu0 0.0
    %856 = vmatprep.subr.mxu0 0.0
    %857 = vmatpush1.msra.mxu0 0.0
    %858 = vmatprep.subr.mxu0 0.0
    %859 = vmatpush1.msra.mxu0 0.0
    %860 = vmatprep.subr.mxu0 0.0
    %861 = vmatpush1.msra.mxu0 0.0
    %862 = vmatprep.subr.mxu0 0.0
    %863 = vmatpush1.msra.mxu0 0.0
    %864 = vmatprep.subr.mxu0 0.0
    %865 = vmatpush1.msra.mxu0 0.0
    %866 = vmatprep.subr.mxu0 0.0
    %867 = vmatpush1.msra.mxu0 0.0
    %868 = vmatprep.subr.mxu0 0.0
    %869 = vmatpush1.msra.mxu0 0.0
    %870 = vmatprep.subr.mxu0 0.0
    %871 = vmatpush1.msra.mxu0 0.0
    %872 = vmatprep.subr.mxu0 0.0
    %873 = vmatpush1.msra.mxu0 0.0
    %874 = vmatprep.subr.mxu0 0.0
    %875 = vmatpush1.msra.mxu0 0.0
    %876 = vmatprep.subr.mxu0 0.0
    %877 = vmatpush1.msra.mxu0 0.0
    %878 = vmatprep.subr.mxu0 0.0
    %879 = vmatpush1.msra.mxu0 0.0
    %880 = vmatprep.subr.mxu0 0.0
    %881 = vmatpush1.msra.mxu0 0.0
    %882 = vmatprep.subr.mxu0 0.0
    %883 = vmatpush1.msra.mxu0 0.0
    %884 = vmatprep.subr.mxu0 0.0
    %885 = vmatpush1.msra.mxu0 0.0
    %886 = vmatprep.subr.mxu0 0.0
    %887 = vmatpush1.msra.mxu0 0.0
    %888 = vmatprep.subr.mxu0 0.0
    %889 = vmatpush1.msra.mxu0 0.0
    %890 = vmatprep.subr.mxu0 0.0
    %891 = vmatpush1.msra.mxu0 0.0
    %892 = vmatprep.mubr.f32.mxu0 0.0
    %893 = vmatmul.mubr.f32.gmra.mrb[0].mxu0 %v728
    %v894 = vpop.f32.mrb[0].mxu0
    %v895 = vadd.f32 %v713, %v894
    %v896 = vpop.f32.mrb[0].mxu0
    %897 = vmatprep.mubr.f32.mxu0 0.0
    %898 = vmatmul.mubr.f32.gmra.mrb[0].mxu0 %v731
    %v899 = vpop.f32.mrb[0].mxu0
    %v900 = vadd.f32 %v717, %v899
    %v901 = vpop.f32.mrb[0].mxu0
    %902 = vmatprep.mubr.f32.mxu0 0.0
    %903 = vmatmul.mubr.f32.gmra.mrb[0].mxu0 %v734
    %v904 = vpop.f32.mrb[0].mxu0
    %v905 = vadd.f32 %v721, %v904
    %v906 = vpop.f32.mrb[0].mxu0
    %907 = vmatprep.mubr.f32.mxu0 0.0
    %908 = vmatmul.mubr.f32.gmra.mrb[0].mxu0 %v737
    %v909 = vpop.f32.mrb[0].mxu0
    %v910 = vadd.f32 %v725, %v909
    %v911 = vpop.f32.mrb[0].mxu0
    %912 = vdwg.mxu0
    %v913 = vmax.f32 %v895, 0.0
    %v914 = vmax.f32 %v900, 0.0
    %v915 = vmax.f32 %v905, 0.0
    %v916 = vmax.f32 %v910, 0.0
    %v917 = vld [vmem:[#allocation2] sm:$0xff]
    %v918 = vld [vmem:[#allocation2 + $0x8] sm:$0xff]
    %919 = vset.pattern.permute.xlu0 5
    %920 = vperm.xlu0 %919, %v47
    %v921 = vpop.permute.xlu0 %920
    %923 = vset.pattern.permute.xlu0 5
    %924 = vperm.xlu0 %923, %v48
    %v925 = vpop.permute.xlu0 %924
    %v928 = vsel %vm197, %v917, 0
    %v931 = vsel %vm197, %v918, 0
    %933 = vmatprep.subr.mxu0 0.0
    %934 = vmatpush1.msra.mxu0 %v913
    %935 = vmatprep.subr.mxu0 0.0
    %936 = vmatpush1.msra.mxu0 %v914
    %937 = vmatprep.subr.mxu0 0.0
    %938 = vmatpush1.msra.mxu0 %v915
    %939 = vmatprep.subr.mxu0 0.0
    %940 = vmatpush1.msra.mxu0 %v916
    %941 = vmatprep.subr.mxu0 0.0
    %942 = vmatpush1.msra.mxu0 0.0
    %943 = vmatprep.subr.mxu0 0.0
    %944 = vmatpush1.msra.mxu0 0.0
    %945 = vmatprep.subr.mxu0 0.0
    %946 = vmatpush1.msra.mxu0 0.0
    %947 = vmatprep.subr.mxu0 0.0
    %948 = vmatpush1.msra.mxu0 0.0
    %949 = vmatprep.subr.mxu0 0.0
    %950 = vmatpush1.msra.mxu0 0.0
    %951 = vmatprep.subr.mxu0 0.0
    %952 = vmatpush1.msra.mxu0 0.0
    %953 = vmatprep.subr.mxu0 0.0
    %954 = vmatpush1.msra.mxu0 0.0
    %955 = vmatprep.subr.mxu0 0.0
    %956 = vmatpush1.msra.mxu0 0.0
    %957 = vmatprep.subr.mxu0 0.0
    %958 = vmatpush1.msra.mxu0 0.0
    %959 = vmatprep.subr.mxu0 0.0
    %960 = vmatpush1.msra.mxu0 0.0
    %961 = vmatprep.subr.mxu0 0.0
    %962 = vmatpush1.msra.mxu0 0.0
    %963 = vmatprep.subr.mxu0 0.0
    %964 = vmatpush1.msra.mxu0 0.0
    %965 = vmatprep.subr.mxu0 0.0
    %966 = vmatpush1.msra.mxu0 0.0
    %967 = vmatprep.subr.mxu0 0.0
    %968 = vmatpush1.msra.mxu0 0.0
    %969 = vmatprep.subr.mxu0 0.0
    %970 = vmatpush1.msra.mxu0 0.0
    %971 = vmatprep.subr.mxu0 0.0
    %972 = vmatpush1.msra.mxu0 0.0
    %973 = vmatprep.subr.mxu0 0.0
    %974 = vmatpush1.msra.mxu0 0.0
    %975 = vmatprep.subr.mxu0 0.0
    %976 = vmatpush1.msra.mxu0 0.0
    %977 = vmatprep.subr.mxu0 0.0
    %978 = vmatpush1.msra.mxu0 0.0
    %979 = vmatprep.subr.mxu0 0.0
    %980 = vmatpush1.msra.mxu0 0.0
    %981 = vmatprep.subr.mxu0 0.0
    %982 = vmatpush1.msra.mxu0 0.0
    %983 = vmatprep.subr.mxu0 0.0
    %984 = vmatpush1.msra.mxu0 0.0
    %985 = vmatprep.subr.mxu0 0.0
    %986 = vmatpush1.msra.mxu0 0.0
    %987 = vmatprep.subr.mxu0 0.0
    %988 = vmatpush1.msra.mxu0 0.0
    %989 = vmatprep.subr.mxu0 0.0
    %990 = vmatpush1.msra.mxu0 0.0
    %991 = vmatprep.subr.mxu0 0.0
    %992 = vmatpush1.msra.mxu0 0.0
    %993 = vmatprep.subr.mxu0 0.0
    %994 = vmatpush1.msra.mxu0 0.0
    %995 = vmatprep.subr.mxu0 0.0
    %996 = vmatpush1.msra.mxu0 0.0
    %997 = vmatprep.mubr.f32.mxu0 0.0
    %998 = vmatmul.mubr.f32.gmra.mrb[0].mxu0 %v928
    %v999 = vpop.f32.mrb[0].mxu0
    %v1000 = vadd.f32 %v921, %v999
    %v1001 = vpop.f32.mrb[0].mxu0
    %1002 = vmatprep.mubr.f32.mxu0 0.0
    %1003 = vmatmul.mubr.f32.gmra.mrb[0].mxu0 %v931
    %v1004 = vpop.f32.mrb[0].mxu0
    %v1005 = vadd.f32 %v925, %v1004
    %v1006 = vpop.f32.mrb[0].mxu0
    %1007 = vdwg.mxu0
    %1008 = vst.msk [vmem:[%s8] sm:$0xff] %vm505, %v1000
    %1009 = vst.msk [vmem:[%s8 + $0x8] sm:$0xff] %vm505, %v1005
    // Predicated region
    $region38: #{tpu_custom_call.1} parent=1 // pred_check
      _
    $region39: #{tpu_custom_call.1} parent=1 // pred_check_branch
      %1011 = sbr.rel (0) target = $region41
    $region40: #{tpu_custom_call.1} parent=1 // pred_region
      _
    $region41: #{tpu_custom_call.1} parent=1 // pred_fallthru
      _
    // Predicated region
    $region42: #{tpu_custom_call.1} parent=1 // pred_check
      _
    $region43: #{tpu_custom_call.1} parent=1 // pred_check_branch
      %1013 = sbr.rel (0) target = $region45
    $region44: #{tpu_custom_call.1} parent=1 // pred_region
      _
    $region45: #{tpu_custom_call.1} parent=1 // pred_fallthru
      _
    // Predicated region
    $region46: #{tpu_custom_call.1} parent=1 // pred_check
      _
    $region47: #{tpu_custom_call.1} parent=1 // pred_check_branch
      %1015 = sbr.rel (0) target = $region49
    $region48: #{tpu_custom_call.1} parent=1 // pred_region
      _
    $region49: #{tpu_custom_call.1} parent=1 // pred_fallthru
      _
    // Predicated region
    $region50: #{tpu_custom_call.1} parent=1 // pred_check
      _
    $region51: #{tpu_custom_call.1} parent=1 // pred_check_branch
      %1017 = sbr.rel (0) target = $region53
    $region52: #{tpu_custom_call.1} parent=1 // pred_region
      _
    $region53: #{tpu_custom_call.1} parent=1 // pred_fallthru
      _
    %1018 = vsyncpa [#allocation3], 1

</llo_original>
